<compile_context>
chip_gen: v7x
topology: tpu7x:2x2x1
jax: 0.10.0
libtpu: 0.0.40
codegen_flags: <defaults>
</compile_context>

<pallas_src>
import functools

import jax
import jax.numpy as jnp
from jax.experimental import pallas as pl
from jax.experimental.pallas import tpu as pltpu


def _round_up(x: int, m: int) -> int:
    return ((x + m - 1) // m) * m


def _fused_mlp_kernel(x_ref, *refs, num_layers: int, out_dims):
    """Whole MLP forward for one batch tile; intermediates stay in vregs."""
    w_refs = refs[:num_layers]          # bf16 weights, true shapes
    b_ref = refs[num_layers]            # f32 packed biases (num_layers, max_w)
    o_ref = refs[num_layers + 1]        # f32 output tile (TB, 128-padded)

    h = x_ref[...]                      # f32 [TB, D_in]
    for i in range(num_layers):
        w = w_refs[i][...]                            # bf16 [D_in_i, D_out_i]
        b = b_ref[i:i + 1, :out_dims[i]]              # f32  [1, D_out_i]
        # bf16 MXU feed, f32 accumulation.
        h = jnp.dot(h.astype(w.dtype), w, preferred_element_type=jnp.float32) + b
        if i < num_layers - 1:                        # ReLU on hidden layers only
            h = jnp.maximum(h, 0.0)
    o_ref[...] = h.astype(o_ref.dtype)                # lane-dense store


def init_net_params(structure, key):
    """Deterministic params matching nn.Linear shapes (stored as [in, out])."""
    params = []
    nlayers = len(structure)
    for i in range(1, nlayers):
        fan_in, fan_out = structure[i - 1], structure[i]
        key, wk, bk = jax.random.split(key, 3)
        bound = 1.0 / jnp.sqrt(jnp.float32(fan_in))   # mimic torch default init
        w = jax.random.uniform(wk, (fan_in, fan_out), jnp.float32, -bound, bound)
        b = jax.random.uniform(bk, (fan_out,), jnp.float32, -bound, bound)
        params.append((w, b))
    return params


def prepare_params(params):
    """One-time prep: bf16 weights, final-layer lane padding, packed f32 biases.

    Zero-padded output columns of the last layer (zero weights + zero bias)
    are sliced off by the wrapper, so numerics match the unpadded model.
    """
    num_layers = len(params)
    weights = []
    out_dims = []
    for li, (w, _) in enumerate(params):
        d_in, d_out = w.shape
        d_out_p = _round_up(d_out, 128) if li == num_layers - 1 else d_out
        w_p = jnp.zeros((d_in, d_out_p), jnp.float32)
        w_p = w_p.at[:, :d_out].set(w.astype(jnp.float32))
        weights.append(w_p.astype(jnp.bfloat16))      # MXU-native, f32 accum in-kernel
        out_dims.append(d_out_p)

    max_w = max(out_dims)
    biases = jnp.zeros((num_layers, max_w), jnp.float32)
    for li, (_, b) in enumerate(params):
        biases = biases.at[li, : b.shape[0]].set(b.astype(jnp.float32))

    return weights, biases, tuple(out_dims), out_dims[-1]


def net_forward(prepared, x, out_dim):
    """Equivalent of Net.forward: ReLU(hidden_i(x)) ... then out(x)."""
    weights, biases, out_dims, d_out_padded = prepared
    x = x.astype(jnp.float32)           # matches `x = x.float()` in the torch module
    B, d_in = x.shape
    num_layers = len(weights)

    # Batch tile: multiple of 8 sublanes; 128-row tiles once the batch is big
    # enough to shard across TensorCores (v7x megacore) / pipeline DMAs.
    tb = 128 if B >= 256 else _round_up(B, 8)
    b_pad = _round_up(B, tb)
    if b_pad != B:
        x = jnp.pad(x, ((0, b_pad - B), (0, 0)))
    grid = (b_pad // tb,)

    in_specs = [pl.BlockSpec((tb, d_in), lambda i: (i, 0))]
    for w in weights:
        in_specs.append(pl.BlockSpec(w.shape, lambda i: (0, 0)))   # weights stay resident
    in_specs.append(pl.BlockSpec(biases.shape, lambda i: (0, 0)))  # single packed bias DMA
    out_specs = pl.BlockSpec((tb, d_out_padded), lambda i: (i, 0))

    # Advisory cost estimate so XLA can overlap surrounding ops.
    flops = 2 * b_pad * sum(w.shape[0] * w.shape[1] for w in weights)
    bytes_accessed = (
        b_pad * d_in * 4
        + sum(w.size * w.dtype.itemsize for w in weights)
        + biases.size * biases.dtype.itemsize
        + b_pad * d_out_padded * 4
    )
    cost = pl.CostEstimate(flops=flops, transcendentals=0,
                           bytes_accessed=bytes_accessed)

    # Explicit VMEM budget: resident weights/biases + double-buffered tiles,
    # with headroom; capped at 32 MiB (safe on v5e/v6e/v7x scoped limits).
    # TODO(synk): if a single padded weight ever exceeds this budget, switch
    # that layer to a K-tiled reduction (grid "arbitrary" axis + f32 scratch).
    block_bytes = (
        tb * d_in * 4
        + sum(w.size * w.dtype.itemsize for w in weights)
        + biases.size * biases.dtype.itemsize
        + tb * d_out_padded * 4
    )
    vmem_limit = min(max(4 * block_bytes + (2 << 20), 4 << 20), 32 << 20)

    out_padded = pl.pallas_call(
        functools.partial(_fused_mlp_kernel, num_layers=num_layers,
                          out_dims=out_dims),
        out_shape=jax.ShapeDtypeStruct((b_pad, d_out_padded), jnp.float32),
        grid=grid,
        in_specs=in_specs,
        out_specs=out_specs,
        compiler_params=pltpu.CompilerParams(
            dimension_semantics=("parallel",),
            vmem_limit_bytes=vmem_limit),
        cost_estimate=cost,
    )(x, *weights, biases)

    return out_padded[:B, :out_dim]


def _reference_forward(params, x):
    """Pure-JAX f32 reference of Net.forward (for a sanity check)."""
    h = x.astype(jnp.float32)
    n = len(params)
    for i, (w, b) in enumerate(params):
        h = h @ w + b
        if i < n - 1:
            h = jnp.maximum(h, 0.0)
    return h


if __name__ == "__main__":
    # structure = [in, hidden1, hidden2, out]
    structure = [16, 32, 32, 8]
    batch = 8

    key = jax.random.PRNGKey(0)
    key, xk = jax.random.split(key)
    x = jax.random.normal(xk, (batch, structure[0]), jnp.float32)

    params = init_net_params(structure, key)
    prepared = prepare_params(params)   # bf16 cast + packing + padding, done once

    out = net_forward(prepared, x, out_dim=structure[-1])
    out = jax.block_until_ready(out)

    assert out.shape == (batch, structure[-1])
    assert out.dtype == jnp.float32
    ref = _reference_forward(params, x)
    # bf16 MXU feeds with f32 accumulation -> small deviation from f32 reference.
    assert jnp.allclose(out, ref, rtol=5e-2, atol=5e-2), "mismatch vs f32 reference"
    print("KERNEL_OK")
</pallas_src>

<mosaic_0001>
module attributes {stable_mosaic.version = 11 : i64} {
  func.func @_fused_mlp_kernel(%arg0: i32, %arg1: memref<8x16xf32, #tpu.memory_space<vmem>>, %arg2: memref<16x32xbf16, #tpu.memory_space<vmem>>, %arg3: memref<32x32xbf16, #tpu.memory_space<vmem>>, %arg4: memref<32x128xbf16, #tpu.memory_space<vmem>>, %arg5: memref<3x128xf32, #tpu.memory_space<vmem>>, %arg6: memref<8x128xf32, #tpu.memory_space<vmem>>) attributes {dimension_semantics = [#tpu.dimension_semantics<parallel>], iteration_bounds = array<i64: 1>, scalar_prefetch = 0 : i64, scratch_operands = 0 : i64, tpu.core_type = #tpu.core_type<tc>, window_params = [{transform_indices = @transform_0, window_bounds = array<i64: 8, 16>}, {pipeline_mode = #tpu.pipeline_mode<synchronous>, transform_indices = @transform_1, window_bounds = array<i64: 16, 32>}, {pipeline_mode = #tpu.pipeline_mode<synchronous>, transform_indices = @transform_2, window_bounds = array<i64: 32, 32>}, {pipeline_mode = #tpu.pipeline_mode<synchronous>, transform_indices = @transform_3, window_bounds = array<i64: 32, 128>}, {pipeline_mode = #tpu.pipeline_mode<synchronous>, transform_indices = @transform_4, window_bounds = array<i64: 3, 128>}, {transform_indices = @transform_5, window_bounds = array<i64: 8, 128>}]} {
    %c0 = arith.constant 0 : index
    %c0_0 = arith.constant 0 : index
    %0 = vector.load %arg1[%c0, %c0_0] : memref<8x16xf32, #tpu.memory_space<vmem>>, vector<8x16xf32>
    %c0_1 = arith.constant 0 : index
    %c0_2 = arith.constant 0 : index
    %1 = vector.load %arg2[%c0_1, %c0_2] : memref<16x32xbf16, #tpu.memory_space<vmem>>, vector<16x32xbf16>
    %c0_3 = arith.constant 0 : index
    %c0_4 = arith.constant 0 : index
    %2 = vector.load %arg5[%c0_3, %c0_4] : memref<3x128xf32, #tpu.memory_space<vmem>>, vector<1x32xf32>
    %3 = arith.truncf %0 : vector<8x16xf32> to vector<8x16xbf16>
    %cst = arith.constant dense<0.000000e+00> : vector<8x32xf32>
    %4 = tpu.matmul %3, %1, %cst {dimension_numbers = #tpu.dot_dimension_numbers<[1], [0], [0], [1], [0, 0, 1, 1], [], []>} : vector<8x16xbf16>, vector<16x32xbf16>, vector<8x32xf32> -> vector<8x32xf32>
    %5 = vector.broadcast %2 : vector<1x32xf32> to vector<8x32xf32>
    %6 = arith.addf %4, %5 : vector<8x32xf32>
    %cst_5 = arith.constant 0.000000e+00 : f32
    %7 = vector.broadcast %cst_5 : f32 to vector<8x32xf32>
    %8 = arith.maximumf %6, %7 : vector<8x32xf32>
    %c0_6 = arith.constant 0 : index
    %c0_7 = arith.constant 0 : index
    %9 = vector.load %arg3[%c0_6, %c0_7] : memref<32x32xbf16, #tpu.memory_space<vmem>>, vector<32x32xbf16>
    %c1 = arith.constant 1 : index
    %c0_8 = arith.constant 0 : index
    %10 = vector.load %arg5[%c1, %c0_8] : memref<3x128xf32, #tpu.memory_space<vmem>>, vector<1x32xf32>
    %11 = arith.truncf %8 : vector<8x32xf32> to vector<8x32xbf16>
    %cst_9 = arith.constant dense<0.000000e+00> : vector<8x32xf32>
    %12 = tpu.matmul %11, %9, %cst_9 {dimension_numbers = #tpu.dot_dimension_numbers<[1], [0], [0], [1], [0, 0, 1, 1], [], []>} : vector<8x32xbf16>, vector<32x32xbf16>, vector<8x32xf32> -> vector<8x32xf32>
    %13 = vector.broadcast %10 : vector<1x32xf32> to vector<8x32xf32>
    %14 = arith.addf %12, %13 : vector<8x32xf32>
    %cst_10 = arith.constant 0.000000e+00 : f32
    %15 = vector.broadcast %cst_10 : f32 to vector<8x32xf32>
    %16 = arith.maximumf %14, %15 : vector<8x32xf32>
    %c0_11 = arith.constant 0 : index
    %c0_12 = arith.constant 0 : index
    %17 = vector.load %arg4[%c0_11, %c0_12] : memref<32x128xbf16, #tpu.memory_space<vmem>>, vector<32x128xbf16>
    %c2 = arith.constant 2 : index
    %c0_13 = arith.constant 0 : index
    %18 = vector.load %arg5[%c2, %c0_13] : memref<3x128xf32, #tpu.memory_space<vmem>>, vector<1x128xf32>
    %19 = arith.truncf %16 : vector<8x32xf32> to vector<8x32xbf16>
    %cst_14 = arith.constant dense<0.000000e+00> : vector<8x128xf32>
    %20 = tpu.matmul %19, %17, %cst_14 {dimension_numbers = #tpu.dot_dimension_numbers<[1], [0], [0], [1], [0, 0, 1, 1], [], []>} : vector<8x32xbf16>, vector<32x128xbf16>, vector<8x128xf32> -> vector<8x128xf32>
    %21 = vector.broadcast %18 : vector<1x128xf32> to vector<8x128xf32>
    %22 = arith.addf %20, %21 : vector<8x128xf32>
    %c0_15 = arith.constant 0 : index
    %c0_16 = arith.constant 0 : index
    %23 = vector.load %arg6[%c0_15, %c0_16] : memref<8x128xf32, #tpu.memory_space<vmem>>, vector<8x128xf32>
    tpu.vector_store %arg6[%c0_15, %c0_16], %22 {strides = array<i32>} : memref<8x128xf32, #tpu.memory_space<vmem>>, vector<8x128xf32>,
    return
  }
  func.func @transform_0(%arg0: i32) -> (i32, i32) {
    %c0_i32 = arith.constant 0 : i32
    %c0_i32_0 = arith.constant 0 : i32
    return %arg0, %c0_i32 : i32, i32
  }
  func.func @transform_1(%arg0: i32) -> (i32, i32) {
    %c0_i32 = arith.constant 0 : i32
    %c0_i32_0 = arith.constant 0 : i32
    %c0_i32_1 = arith.constant 0 : i32
    return %c0_i32, %c0_i32_0 : i32, i32
  }
  func.func @transform_2(%arg0: i32) -> (i32, i32) {
    %c0_i32 = arith.constant 0 : i32
    %c0_i32_0 = arith.constant 0 : i32
    %c0_i32_1 = arith.constant 0 : i32
    return %c0_i32, %c0_i32_0 : i32, i32
  }
  func.func @transform_3(%arg0: i32) -> (i32, i32) {
    %c0_i32 = arith.constant 0 : i32
    %c0_i32_0 = arith.constant 0 : i32
    %c0_i32_1 = arith.constant 0 : i32
    return %c0_i32, %c0_i32_0 : i32, i32
  }
  func.func @transform_4(%arg0: i32) -> (i32, i32) {
    %c0_i32 = arith.constant 0 : i32
    %c0_i32_0 = arith.constant 0 : i32
    %c0_i32_1 = arith.constant 0 : i32
    return %c0_i32, %c0_i32_0 : i32, i32
  }
  func.func @transform_5(%arg0: i32) -> (i32, i32) {
    %c0_i32 = arith.constant 0 : i32
    %c0_i32_0 = arith.constant 0 : i32
    return %arg0, %c0_i32 : i32, i32
  }
}

</mosaic_0001>

<llo_original>
// kernel: tpu_custom_call.1
$region0: #{tpu_custom_call.1}
  #allocation0 [shape = 'u32[]', space=smem, size = 0x4, offset = 0x4, fixed_abs, tag = 'smem constant byte address 0x4 - core index']
  #allocation1 [shape = 'u32[144,128]{1,0:T(1,128)}', space=vmem, size = 0x12000, scoped, tag = 'internal scratch']
  %s0 = inlined_call_operand.hbm [shape: f32[8,16], index: 0, kind: input, shape index: {}]
  %s1 = inlined_call_operand.hbm [shape: bf16[16,32], index: 1, kind: input, shape index: {}]
  %s2 = inlined_call_operand.hbm [shape: bf16[32,32], index: 2, kind: input, shape index: {}]
  %s3 = inlined_call_operand.hbm [shape: bf16[32,128], index: 3, kind: input, shape index: {}]
  %s4 = inlined_call_operand.vmem [shape: f32[3,128], index: 4, kind: input, shape index: {}]
  %s5 = inlined_call_operand.hbm [shape: f32[8,128], index: 5, kind: output, shape index: {}]
  %s6 = sld [smem:[#allocation0]]
  $region46: #{tpu_custom_call.1} parent=0
    _
  %s8 = ssub.s32 1, %s6
  %s9 = scalar_select 0, %s8, %s6
  $region1: #{tpu_custom_call.1} parent=0
    #allocation2 [shape = 'u8[4096]{0}', space=vmem, size = 0x1000, scoped, tag = 'input window, operand 0, single buffered']
    #allocation3 [shape = 's32[1]{0}', space=sflag, size = 0x4, scoped, tag = 'scoped memory for tpu_custom_call.1']
    #allocation4 [shape = 's32[1]{0}', space=sflag, size = 0x4, scoped, tag = 'scoped memory for tpu_custom_call.1']
    #allocation5 [shape = 'u8[4096]{0}', space=vmem, size = 0x1000, scoped, tag = 'input window, operand 1, single buffered']
    #allocation6 [shape = 's32[1]{0}', space=sflag, size = 0x4, scoped, tag = 'scoped memory for tpu_custom_call.1']
    #allocation7 [shape = 'u8[8192]{0}', space=vmem, size = 0x2000, scoped, tag = 'input window, operand 2, single buffered']
    #allocation8 [shape = 'u8[8192]{0}', space=vmem, size = 0x2000, scoped, tag = 'input window, operand 3, single buffered']
    #allocation9 [shape = 's32[1]{0}', space=sflag, size = 0x4, scoped, tag = 'scoped memory for tpu_custom_call.1']
    #allocation10 [shape = 'u8[4096]{0}', space=vmem, size = 0x1000, scoped, tag = 'output window, operand 0, single buffered']
    %10 = vsyncpa [#allocation3], 0
    %11 = vsyncpa [#allocation6], 0
    %12 = vsyncpa [#allocation9], 0
    %13 = vsyncpa [#allocation4], 0
    // Predicated region
    $region2: #{tpu_custom_call.1} parent=1 // pred_check
      _
    $region3: #{tpu_custom_call.1} parent=1 // pred_check_branch
      %15 = sbr.rel (0) target = $region5
    $region4: #{tpu_custom_call.1} parent=1 // pred_region
      %s17 = ssub.s32 128, 128
      %18 = vsyncadd [#allocation3], %s17
      %s20 = sshll.u32 [#allocation2], 4
      %s21 = int_to_ptr.vmem [resolvable:$true] %s20
      %23 = dma.hbm_to_vmem [thread:$0]  %s0, 128, %s21, [#allocation3]
    $region5: #{tpu_custom_call.1} parent=1 // pred_fallthru
      _
    // Predicated region
    $region6: #{tpu_custom_call.1} parent=1 // pred_check
      _
    $region7: #{tpu_custom_call.1} parent=1 // pred_check_branch
      %25 = sbr.rel (0) target = $region9
    $region8: #{tpu_custom_call.1} parent=1 // pred_region
      %s27 = ssub.s32 128, 128
      %28 = vsyncadd [#allocation6], %s27
      %s29 = sshll.u32 [#allocation5], 4
      %s30 = int_to_ptr.vmem [resolvable:$true] %s29
      %35 = dma.hbm_to_vmem [thread:$0]  %s1, 128, %s30, [#allocation6], 64, 64, 4
    $region9: #{tpu_custom_call.1} parent=1 // pred_fallthru
      _
    // Predicated region
    $region10: #{tpu_custom_call.1} parent=1 // pred_check
      _
    $region11: #{tpu_custom_call.1} parent=1 // pred_check_branch
      %37 = sbr.rel (0) target = $region13
    $region12: #{tpu_custom_call.1} parent=1 // pred_region
      %s39 = ssub.s32 256, 256
      %40 = vsyncadd [#allocation6], %s39
      %s41 = sshll.u32 [#allocation7], 4
      %s42 = int_to_ptr.vmem [resolvable:$true] %s41
      %47 = dma.hbm_to_vmem [thread:$0]  %s2, 256, %s42, [#allocation6], 64, 64, 4
    $region13: #{tpu_custom_call.1} parent=1 // pred_fallthru
      _
    // Predicated region
    $region14: #{tpu_custom_call.1} parent=1 // pred_check
      _
    $region15: #{tpu_custom_call.1} parent=1 // pred_check_branch
      %49 = sbr.rel (0) target = $region17
    $region16: #{tpu_custom_call.1} parent=1 // pred_region
      %s51 = ssub.s32 256, 256
      %52 = vsyncadd [#allocation9], %s51
      %s53 = sshll.u32 [#allocation8], 4
      %s54 = int_to_ptr.vmem [resolvable:$true] %s53
      %59 = dma.hbm_to_vmem [thread:$0]  %s3, 256, %s54, [#allocation9], 64, 64, 4
    $region17: #{tpu_custom_call.1} parent=1 // pred_fallthru
      _
    // Predicated region
    $region18: #{tpu_custom_call.1} parent=1 // pred_check
      _
    $region19: #{tpu_custom_call.1} parent=1 // pred_check_branch
      %61 = sbr.rel (0) target = $region21
    $region20: #{tpu_custom_call.1} parent=1 // pred_region
      _
    $region21: #{tpu_custom_call.1} parent=1 // pred_fallthru
      _
    // Predicated region
    $region22: #{tpu_custom_call.1} parent=1 // pred_check
      _
    $region23: #{tpu_custom_call.1} parent=1 // pred_check_branch
      %63 = sbr.rel (0) target = $region25
    $region24: #{tpu_custom_call.1} parent=1 // pred_region
      %64 = dma.done [#allocation3], 128
    $region25: #{tpu_custom_call.1} parent=1 // pred_fallthru
      _
    // Predicated region
    $region26: #{tpu_custom_call.1} parent=1 // pred_check
      _
    $region27: #{tpu_custom_call.1} parent=1 // pred_check_branch
      %66 = sbr.rel (0) target = $region29
    $region28: #{tpu_custom_call.1} parent=1 // pred_region
      %67 = dma.done [#allocation6], 128
    $region29: #{tpu_custom_call.1} parent=1 // pred_fallthru
      _
    // Predicated region
    $region30: #{tpu_custom_call.1} parent=1 // pred_check
      _
    $region31: #{tpu_custom_call.1} parent=1 // pred_check_branch
      %69 = sbr.rel (0) target = $region33
    $region32: #{tpu_custom_call.1} parent=1 // pred_region
      %70 = dma.done [#allocation6], 256
    $region33: #{tpu_custom_call.1} parent=1 // pred_fallthru
      _
    // Predicated region
    $region34: #{tpu_custom_call.1} parent=1 // pred_check
      _
    $region35: #{tpu_custom_call.1} parent=1 // pred_check_branch
      %72 = sbr.rel (0) target = $region37
    $region36: #{tpu_custom_call.1} parent=1 // pred_region
      %73 = dma.done [#allocation9], 256
    $region37: #{tpu_custom_call.1} parent=1 // pred_fallthru
      _
    %v75 = vld [vmem:[#allocation2] sm:$0xff]
    %v76 = vld [vmem:[#allocation5] sm:$0xf]
    %v77 = vld [vmem:[#allocation5 + $0x4] sm:$0xf]
    %v78 = vld [vmem:[%s4] sm:$0x1]
    %v79 = vpack.c.bf16 %v75, %v75
    %v80 = vlaneseq
    %v81 = vshrl.u32 %v80, 7
    %v82 = vsub.s32 0, %v81
    %v83 = vrot.slane %v78, %v82
    %v86 = vunpack.c.l.b16 %v76
    %v87 = vunpack.c.l.b16 %v77
    %v88 = vpack.c.b16 %v87, %v86
    %vm90 = vcmask 130048
    %v92 = vsel %vm90, %v79, 0
    %94 = vmatprep.subr.bf16.mxu0 0
    %95 = vmatpush1.bf16.msra.mxu0 %v88
    %96 = vmatprep.subr.bf16.mxu0 0
    %97 = vmatpush1.bf16.msra.mxu0 0
    %98 = vmatprep.subr.bf16.mxu0 0
    %99 = vmatpush1.bf16.msra.mxu0 0
    %100 = vmatprep.subr.bf16.mxu0 0
    %101 = vmatpush1.bf16.msra.mxu0 0
    %102 = vmatprep.subr.bf16.mxu0 0
    %103 = vmatpush1.bf16.msra.mxu0 0
    %104 = vmatprep.subr.bf16.mxu0 0
    %105 = vmatpush1.bf16.msra.mxu0 0
    %106 = vmatprep.subr.bf16.mxu0 0
    %107 = vmatpush1.bf16.msra.mxu0 0
    %108 = vmatprep.subr.bf16.mxu0 0
    %109 = vmatpush1.bf16.msra.mxu0 0
    %110 = vmatprep.subr.bf16.mxu0 0
    %111 = vmatpush1.bf16.msra.mxu0 0
    %112 = vmatprep.subr.bf16.mxu0 0
    %113 = vmatpush1.bf16.msra.mxu0 0
    %114 = vmatprep.subr.bf16.mxu0 0
    %115 = vmatpush1.bf16.msra.mxu0 0
    %116 = vmatprep.subr.bf16.mxu0 0
    %117 = vmatpush1.bf16.msra.mxu0 0
    %118 = vmatprep.subr.bf16.mxu0 0
    %119 = vmatpush1.bf16.msra.mxu0 0
    %120 = vmatprep.subr.bf16.mxu0 0
    %121 = vmatpush1.bf16.msra.mxu0 0
    %122 = vmatprep.subr.bf16.mxu0 0
    %123 = vmatpush1.bf16.msra.mxu0 0
    %124 = vmatprep.subr.bf16.mxu0 0
    %125 = vmatpush1.bf16.msra.mxu0 0
    %126 = vmatprep.mubr.bf16.mxu0 0
    %127 = vmatmul.mubr.bf16.gmra.mrb[0].mxu0 %v92
    %v128 = vpop.f32.mrb[0].mxu0
    %v129 = vadd.f32 %v83, %v128
    %v130 = vpop.f32.mrb[0].mxu0
    %v131 = vpop.f32.mrb[0].mxu0
    %v132 = vpop.f32.mrb[0].mxu0
    %133 = vdwg.mxu0
    %v134 = vmax.f32 %v129, 0.0
    %v135 = vld [vmem:[#allocation7] sm:$0xf]
    %v136 = vld [vmem:[#allocation7 + $0x4] sm:$0xf]
    %v137 = vld [vmem:[#allocation7 + $0x8] sm:$0xf]
    %v138 = vld [vmem:[#allocation7 + $0xc] sm:$0xf]
    %v139 = vld [vmem:[%s4 + $0x1] sm:$0x1]
    %v140 = vpack.c.bf16 %v134, %v134
    %v141 = vlaneseq
    %v142 = vshrl.u32 %v141, 7
    %v143 = vsub.s32 0, %v142
    %v144 = vrot.slane %v139, %v143
    %v149 = vunpack.c.l.b16 %v135
    %v150 = vunpack.c.l.b16 %v136
    %v151 = vunpack.c.l.b16 %v137
    %v152 = vunpack.c.l.b16 %v138
    %v153 = vpack.c.b16 %v150, %v149
    %v154 = vpack.c.b16 %v152, %v151
    %vm157 = vcmask 261120
    %v159 = vsel %vm157, %v140, 0
    %161 = vmatprep.subr.bf16.mxu0 0
    %162 = vmatpush1.bf16.msra.mxu0 %v153
    %163 = vmatprep.subr.bf16.mxu0 0
    %164 = vmatpush1.bf16.msra.mxu0 %v154
    %165 = vmatprep.subr.bf16.mxu0 0
    %166 = vmatpush1.bf16.msra.mxu0 0
    %167 = vmatprep.subr.bf16.mxu0 0
    %168 = vmatpush1.bf16.msra.mxu0 0
    %169 = vmatprep.subr.bf16.mxu0 0
    %170 = vmatpush1.bf16.msra.mxu0 0
    %171 = vmatprep.subr.bf16.mxu0 0
    %172 = vmatpush1.bf16.msra.mxu0 0
    %173 = vmatprep.subr.bf16.mxu0 0
    %174 = vmatpush1.bf16.msra.mxu0 0
    %175 = vmatprep.subr.bf16.mxu0 0
    %176 = vmatpush1.bf16.msra.mxu0 0
    %177 = vmatprep.subr.bf16.mxu0 0
    %178 = vmatpush1.bf16.msra.mxu0 0
    %179 = vmatprep.subr.bf16.mxu0 0
    %180 = vmatpush1.bf16.msra.mxu0 0
    %181 = vmatprep.subr.bf16.mxu0 0
    %182 = vmatpush1.bf16.msra.mxu0 0
    %183 = vmatprep.subr.bf16.mxu0 0
    %184 = vmatpush1.bf16.msra.mxu0 0
    %185 = vmatprep.subr.bf16.mxu0 0
    %186 = vmatpush1.bf16.msra.mxu0 0
    %187 = vmatprep.subr.bf16.mxu0 0
    %188 = vmatpush1.bf16.msra.mxu0 0
    %189 = vmatprep.subr.bf16.mxu0 0
    %190 = vmatpush1.bf16.msra.mxu0 0
    %191 = vmatprep.subr.bf16.mxu0 0
    %192 = vmatpush1.bf16.msra.mxu0 0
    %193 = vmatprep.mubr.bf16.mxu0 0
    %194 = vmatmul.mubr.bf16.gmra.mrb[0].mxu0 %v159
    %v195 = vpop.f32.mrb[0].mxu0
    %v196 = vadd.f32 %v144, %v195
    %v197 = vpop.f32.mrb[0].mxu0
    %v198 = vpop.f32.mrb[0].mxu0
    %v199 = vpop.f32.mrb[0].mxu0
    %200 = vdwg.mxu0
    %v201 = vmax.f32 %v196, 0.0
    %v202 = vld [vmem:[#allocation8] sm:$0xf]
    %v203 = vld [vmem:[#allocation8 + $0x4] sm:$0xf]
    %v204 = vld [vmem:[#allocation8 + $0x8] sm:$0xf]
    %v205 = vld [vmem:[#allocation8 + $0xc] sm:$0xf]
    %v206 = vld [vmem:[%s4 + $0x2] sm:$0x1]
    %v207 = vpack.c.bf16 %v201, %v201
    %v208 = vlaneseq
    %v209 = vshrl.u32 %v208, 7
    %v210 = vsub.s32 0, %v209
    %v211 = vrot.slane %v206, %v210
    %v216 = vunpack.c.l.b16 %v202
    %v217 = vunpack.c.l.b16 %v203
    %v218 = vunpack.c.l.b16 %v204
    %v219 = vunpack.c.l.b16 %v205
    %v220 = vpack.c.b16 %v217, %v216
    %v221 = vpack.c.b16 %v219, %v218
    %v225 = vsel %vm157, %v207, 0
    %227 = vmatprep.subr.bf16.mxu0 0
    %228 = vmatpush1.bf16.msra.mxu0 %v220
    %229 = vmatprep.subr.bf16.mxu0 0
    %230 = vmatpush1.bf16.msra.mxu0 %v221
    %231 = vmatprep.subr.bf16.mxu0 0
    %232 = vmatpush1.bf16.msra.mxu0 0
    %233 = vmatprep.subr.bf16.mxu0 0
    %234 = vmatpush1.bf16.msra.mxu0 0
    %235 = vmatprep.subr.bf16.mxu0 0
    %236 = vmatpush1.bf16.msra.mxu0 0
    %237 = vmatprep.subr.bf16.mxu0 0
    %238 = vmatpush1.bf16.msra.mxu0 0
    %239 = vmatprep.subr.bf16.mxu0 0
    %240 = vmatpush1.bf16.msra.mxu0 0
    %241 = vmatprep.subr.bf16.mxu0 0
    %242 = vmatpush1.bf16.msra.mxu0 0
    %243 = vmatprep.subr.bf16.mxu0 0
    %244 = vmatpush1.bf16.msra.mxu0 0
    %245 = vmatprep.subr.bf16.mxu0 0
    %246 = vmatpush1.bf16.msra.mxu0 0
    %247 = vmatprep.subr.bf16.mxu0 0
    %248 = vmatpush1.bf16.msra.mxu0 0
    %249 = vmatprep.subr.bf16.mxu0 0
    %250 = vmatpush1.bf16.msra.mxu0 0
    %251 = vmatprep.subr.bf16.mxu0 0
    %252 = vmatpush1.bf16.msra.mxu0 0
    %253 = vmatprep.subr.bf16.mxu0 0
    %254 = vmatpush1.bf16.msra.mxu0 0
    %255 = vmatprep.subr.bf16.mxu0 0
    %256 = vmatpush1.bf16.msra.mxu0 0
    %257 = vmatprep.subr.bf16.mxu0 0
    %258 = vmatpush1.bf16.msra.mxu0 0
    %259 = vmatprep.mubr.bf16.mxu0 0
    %260 = vmatmul.mubr.bf16.gmra.mrb[0].mxu0 %v225
    %v261 = vpop.f32.mrb[0].mxu0
    %v262 = vadd.f32 %v211, %v261
    %v263 = vpop.f32.mrb[0].mxu0
    %v264 = vpop.f32.mrb[0].mxu0
    %v265 = vpop.f32.mrb[0].mxu0
    %266 = vdwg.mxu0
    %267 = vst [vmem:[#allocation10] sm:$0xff] %v262
    // Predicated region
    $region38: #{tpu_custom_call.1} parent=1 // pred_check
      _
    $region39: #{tpu_custom_call.1} parent=1 // pred_check_branch
      %269 = sbr.rel (0) target = $region41
    $region40: #{tpu_custom_call.1} parent=1 // pred_region
      %s271 = ssub.s32 128, 128
      %272 = vsyncadd [#allocation4], %s271
      %s274 = sshll.u32 [#allocation10], 4
      %s275 = int_to_ptr.vmem [resolvable:$true] %s274
      %277 = dma.vmem_to_hbm [thread:$0]  %s275, 128, %s5, [#allocation4]
    $region41: #{tpu_custom_call.1} parent=1 // pred_fallthru
      _
    // Predicated region
    $region42: #{tpu_custom_call.1} parent=1 // pred_check
      _
    $region43: #{tpu_custom_call.1} parent=1 // pred_check_branch
      %279 = sbr.rel (0) target = $region45
    $region44: #{tpu_custom_call.1} parent=1 // pred_region
      %280 = dma.done [#allocation4], 128
    $region45: #{tpu_custom_call.1} parent=1 // pred_fallthru
      _
    %281 = vsyncpa [#allocation3], 1
    %282 = vsyncpa [#allocation6], 1
    %283 = vsyncpa [#allocation9], 1
    %284 = vsyncpa [#allocation4], 1

</llo_original>
